<compile_context>
chip_gen: v7x
topology: tpu7x:2x2x1
jax: 0.10.0
libtpu: 0.0.40
codegen_flags: <defaults>
</compile_context>

<pallas_src>
import functools

import jax
import jax.numpy as jnp
from jax import lax
from jax.experimental import pallas as pl
from jax.experimental.pallas import tpu as pltpu


LN_EPS = 1e-5


def _make_ffn_kernel(T, d_in, d_hid, k1, k2, add_residual):
    """Build the fused FFN kernel for static (T, d_in, d_hid, k1, k2)."""
    p1 = (k1 - 1) // 2
    p2 = (k2 - 1) // 2

    def conv_same(x2d, K, p, w_ref, b_ref, col_ref):
        """'same' zero-padded conv along rows (time) as one fused matmul."""
        if K == 1:
            return (jnp.dot(x2d, w_ref[...],
                            preferred_element_type=jnp.float32) + b_ref[...])
        C = x2d.shape[1]
        # im2col: col[t, k*C:(k+1)*C] = x[t + k - p]  (zero outside [0, T))
        col_ref[...] = jnp.zeros_like(col_ref)
        for k in range(K):
            o = k - p                      # row shift for this tap
            n = T - abs(o)
            src = max(0, o)
            dst = max(0, -o)
            col_ref[dst:dst + n, k * C:(k + 1) * C] = x2d[src:src + n, :]
        return (jnp.dot(col_ref[...], w_ref[...],
                        preferred_element_type=jnp.float32) + b_ref[...])

    def kernel(x_ref, w1_ref, b1_ref, w2_ref, b2_ref, g_ref, beta_ref,
               out_ref, *scratch):
        s = list(scratch)
        col1 = s.pop(0) if k1 > 1 else None
        col2 = s.pop(0) if k2 > 1 else None

        x = x_ref[0].astype(jnp.float32)                      # (T, d_in)

        h = conv_same(x, k1, p1, w1_ref, b1_ref, col1)        # (T, d_hid)
        h = jnp.maximum(h, 0.0)                               # ReLU
        y = conv_same(h, k2, p2, w2_ref, b2_ref, col2)        # (T, d_in)

        # TODO(synk): nn.Dropout is identity in eval/inference mode; training
        # dropout would need pltpu.prng_seed / pltpu.prng_random_bits.
        if add_residual:
            y = y + x

        # LayerNorm over the channel (lane) dimension.
        mean = jnp.mean(y, axis=-1, keepdims=True)
        ctr = y - mean
        var = jnp.mean(ctr * ctr, axis=-1, keepdims=True)
        y = ctr * lax.rsqrt(var + LN_EPS)
        y = y * g_ref[...] + beta_ref[...]

        out_ref[0] = y.astype(out_ref.dtype)

    return kernel


@functools.partial(jax.jit, static_argnames=("k1", "k2", "add_residual"))
def positionwise_ffn(x_btc, params, *, k1, k2, add_residual):
    """x_btc: (B, T, d_in). params in kernel layout (see to_kernel_layout)."""
    B, T, d_in = x_btc.shape
    w1, b1, w2, b2, gamma, beta = params
    d_hid = w1.shape[1]

    kernel = _make_ffn_kernel(T, d_in, d_hid, k1, k2, add_residual)

    scratch_shapes = []
    if k1 > 1:
        scratch_shapes.append(pltpu.VMEM((T, k1 * d_in), jnp.float32))
    if k2 > 1:
        scratch_shapes.append(pltpu.VMEM((T, k2 * d_hid), jnp.float32))

    return pl.pallas_call(
        kernel,
        out_shape=jax.ShapeDtypeStruct((B, T, d_in), x_btc.dtype),
        grid=(B,),
        in_specs=[
            pl.BlockSpec((1, T, d_in), lambda b: (b, 0, 0)),       # x (only input DMA)
            pl.BlockSpec((k1 * d_in, d_hid), lambda b: (0, 0)),    # conv1 weight (im2col layout)
            pl.BlockSpec((1, d_hid), lambda b: (0, 0)),            # conv1 bias
            pl.BlockSpec((k2 * d_hid, d_in), lambda b: (0, 0)),    # conv2 weight
            pl.BlockSpec((1, d_in), lambda b: (0, 0)),             # conv2 bias
            pl.BlockSpec((1, d_in), lambda b: (0, 0)),             # LN gamma
            pl.BlockSpec((1, d_in), lambda b: (0, 0)),             # LN beta
        ],
        out_specs=pl.BlockSpec((1, T, d_in), lambda b: (b, 0, 0)),
        scratch_shapes=scratch_shapes,
        compiler_params=pltpu.CompilerParams(
            dimension_semantics=("parallel",),
            vmem_limit_bytes=64 * 1024 * 1024,
        ),
    )(x_btc, w1, b1, w2, b2, gamma, beta)


# ----------------------------- parameter setup -----------------------------

def init_params(key, d_in, d_hid, k1, k2):
    """Deterministic params in PyTorch layout: conv weight (O, I, K), bias (O,)."""
    ks = jax.random.split(key, 6)
    s1 = 1.0 / jnp.sqrt(d_in * k1 * 1.0)
    s2 = 1.0 / jnp.sqrt(d_hid * k2 * 1.0)
    w1 = jax.random.normal(ks[0], (d_hid, d_in, k1), jnp.float32) * s1
    b1 = jax.random.normal(ks[1], (d_hid,), jnp.float32) * s1
    w2 = jax.random.normal(ks[2], (d_in, d_hid, k2), jnp.float32) * s2
    b2 = jax.random.normal(ks[3], (d_in,), jnp.float32) * s2
    gamma = 1.0 + 0.1 * jax.random.normal(ks[4], (d_in,), jnp.float32)
    beta = 0.1 * jax.random.normal(ks[5], (d_in,), jnp.float32)
    return (w1, b1, w2, b2, gamma, beta)


def to_kernel_layout(torch_params, k1, k2):
    """PyTorch conv weights -> (K*Cin, Cout) im2col matmul weights."""
    w1, b1, w2, b2, gamma, beta = torch_params
    d_hid, d_in, _ = w1.shape
    w1_k = jnp.transpose(w1, (2, 1, 0)).reshape(k1 * d_in, d_hid)   # [k*Cin+i, o]
    w2_k = jnp.transpose(w2, (2, 1, 0)).reshape(k2 * d_hid, d_in)
    return (w1_k, b1[None, :], w2_k, b2[None, :],
            gamma[None, :], beta[None, :])


# ------------------------------ pure-JAX ref ------------------------------

def ffn_ref(x_btc, torch_params, k1, k2, add_residual):
    """Reference mirroring the PyTorch module (eval mode)."""
    w1, b1, w2, b2, gamma, beta = torch_params
    p1 = (k1 - 1) // 2
    p2 = (k2 - 1) // 2
    dn = ("NCH", "OIH", "NCH")
    h = jnp.transpose(x_btc, (0, 2, 1))                              # (B, d_in, T)
    h = lax.conv_general_dilated(h, w1, (1,), [(p1, p1)],
                                 dimension_numbers=dn) + b1[None, :, None]
    h = jnp.maximum(h, 0.0)
    h = lax.conv_general_dilated(h, w2, (1,), [(p2, p2)],
                                 dimension_numbers=dn) + b2[None, :, None]
    y = jnp.transpose(h, (0, 2, 1))                                  # (B, T, d_in)
    if add_residual:
        y = y + x_btc
    mean = jnp.mean(y, axis=-1, keepdims=True)
    var = jnp.mean(jnp.square(y - mean), axis=-1, keepdims=True)
    y = (y - mean) / jnp.sqrt(var + LN_EPS)
    return y * gamma[None, None, :] + beta[None, None, :]


# ---------------------------------- main ----------------------------------

if __name__ == "__main__":
    B, T, D_IN, D_HID = 2, 16, 32, 64
    K1, K2 = 9, 1          # FastSpeech2 default fft_conv1d_kernel_size

    key = jax.random.PRNGKey(0)
    k_x, k_p = jax.random.split(key)

    x = jax.random.normal(k_x, (B, T, D_IN), jnp.float32)   # (batch, seq, d_in)
    torch_params = init_params(k_p, D_IN, D_HID, K1, K2)
    kparams = to_kernel_layout(torch_params, K1, K2)

    # Exercise both module configurations: d_out given (residual added) and
    # d_out=None (no residual), both followed by LayerNorm.
    for add_residual in (True, False):
        out = positionwise_ffn(x, kparams, k1=K1, k2=K2,
                               add_residual=add_residual)
        out = jax.block_until_ready(out)
        ref = jax.block_until_ready(
            ffn_ref(x, torch_params, K1, K2, add_residual))
        assert out.shape == (B, T, D_IN)
        assert jnp.allclose(out, ref, atol=1e-4, rtol=1e-4), (
            add_residual, float(jnp.max(jnp.abs(out - ref))))

    print("KERNEL_OK")
</pallas_src>

<mosaic_0001>
module attributes {stable_mosaic.version = 11 : i64} {
  func.func @kernel(%arg0: i32, %arg1: memref<1x16x32xf32, #tpu.memory_space<vmem>>, %arg2: memref<288x64xf32, #tpu.memory_space<vmem>>, %arg3: memref<1x64xf32, #tpu.memory_space<vmem>>, %arg4: memref<64x32xf32, #tpu.memory_space<vmem>>, %arg5: memref<1x32xf32, #tpu.memory_space<vmem>>, %arg6: memref<1x32xf32, #tpu.memory_space<vmem>>, %arg7: memref<1x32xf32, #tpu.memory_space<vmem>>, %arg8: memref<1x16x32xf32, #tpu.memory_space<vmem>>, %arg9: memref<16x288xf32, #tpu.memory_space<vmem>>) attributes {dimension_semantics = [#tpu.dimension_semantics<parallel>], iteration_bounds = array<i64: 2>, scalar_prefetch = 0 : i64, scratch_operands = 1 : i64, tpu.core_type = #tpu.core_type<tc>, window_params = [{transform_indices = @transform_0, window_bounds = array<i64: 1, 16, 32>}, {pipeline_mode = #tpu.pipeline_mode<synchronous>, transform_indices = @transform_1, window_bounds = array<i64: 288, 64>}, {pipeline_mode = #tpu.pipeline_mode<synchronous>, transform_indices = @transform_2, window_bounds = array<i64: 1, 64>}, {pipeline_mode = #tpu.pipeline_mode<synchronous>, transform_indices = @transform_3, window_bounds = array<i64: 64, 32>}, {pipeline_mode = #tpu.pipeline_mode<synchronous>, transform_indices = @transform_4, window_bounds = array<i64: 1, 32>}, {pipeline_mode = #tpu.pipeline_mode<synchronous>, transform_indices = @transform_5, window_bounds = array<i64: 1, 32>}, {pipeline_mode = #tpu.pipeline_mode<synchronous>, transform_indices = @transform_6, window_bounds = array<i64: 1, 32>}, {transform_indices = @transform_7, window_bounds = array<i64: 1, 16, 32>}]} {
    %c0 = arith.constant 0 : index
    %c0_0 = arith.constant 0 : index
    %c0_1 = arith.constant 0 : index
    %0 = vector.load %arg1[%c0, %c0_0, %c0_1] : memref<1x16x32xf32, #tpu.memory_space<vmem>>, vector<1x16x32xf32>
    %1 = vector.shape_cast %0 : vector<1x16x32xf32> to vector<16x32xf32>
    %cst = arith.constant 0.000000e+00 : f32
    %2 = vector.broadcast %cst : f32 to vector<16x288xf32>
    %c0_2 = arith.constant 0 : index
    %c0_3 = arith.constant 0 : index
    %3 = vector.load %arg9[%c0_2, %c0_3] : memref<16x288xf32, #tpu.memory_space<vmem>>, vector<16x288xf32>
    tpu.vector_store %arg9[%c0_2, %c0_3], %2 {strides = array<i32>} : memref<16x288xf32, #tpu.memory_space<vmem>>, vector<16x288xf32>,
    %4 = vector.extract_strided_slice %1 {offsets = [0, 0], sizes = [12, 32], strides = [1, 1]} : vector<16x32xf32> to vector<12x32xf32>
    %c4 = arith.constant 4 : index
    %c0_4 = arith.constant 0 : index
    %5 = vector.load %arg9[%c4, %c0_4] : memref<16x288xf32, #tpu.memory_space<vmem>>, vector<12x32xf32>
    tpu.vector_store %arg9[%c4, %c0_4], %4 {strides = array<i32>} : memref<16x288xf32, #tpu.memory_space<vmem>>, vector<12x32xf32>,
    %6 = vector.extract_strided_slice %1 {offsets = [0, 0], sizes = [13, 32], strides = [1, 1]} : vector<16x32xf32> to vector<13x32xf32>
    %c3 = arith.constant 3 : index
    %c32 = arith.constant 32 : index
    %7 = vector.load %arg9[%c3, %c32] : memref<16x288xf32, #tpu.memory_space<vmem>>, vector<13x32xf32>
    tpu.vector_store %arg9[%c3, %c32], %6 {strides = array<i32>} : memref<16x288xf32, #tpu.memory_space<vmem>>, vector<13x32xf32>,
    %8 = vector.extract_strided_slice %1 {offsets = [0, 0], sizes = [14, 32], strides = [1, 1]} : vector<16x32xf32> to vector<14x32xf32>
    %c2 = arith.constant 2 : index
    %c64 = arith.constant 64 : index
    %9 = vector.load %arg9[%c2, %c64] : memref<16x288xf32, #tpu.memory_space<vmem>>, vector<14x32xf32>
    tpu.vector_store %arg9[%c2, %c64], %8 {strides = array<i32>} : memref<16x288xf32, #tpu.memory_space<vmem>>, vector<14x32xf32>,
    %10 = vector.extract_strided_slice %1 {offsets = [0, 0], sizes = [15, 32], strides = [1, 1]} : vector<16x32xf32> to vector<15x32xf32>
    %c1 = arith.constant 1 : index
    %c96 = arith.constant 96 : index
    %11 = vector.load %arg9[%c1, %c96] : memref<16x288xf32, #tpu.memory_space<vmem>>, vector<15x32xf32>
    tpu.vector_store %arg9[%c1, %c96], %10 {strides = array<i32>} : memref<16x288xf32, #tpu.memory_space<vmem>>, vector<15x32xf32>,
    %c0_5 = arith.constant 0 : index
    %c128 = arith.constant 128 : index
    %12 = vector.load %arg9[%c0_5, %c128] : memref<16x288xf32, #tpu.memory_space<vmem>>, vector<16x32xf32>
    tpu.vector_store %arg9[%c0_5, %c128], %1 {strides = array<i32>} : memref<16x288xf32, #tpu.memory_space<vmem>>, vector<16x32xf32>,
    %13 = vector.extract_strided_slice %1 {offsets = [1, 0], sizes = [15, 32], strides = [1, 1]} : vector<16x32xf32> to vector<15x32xf32>
    %c0_6 = arith.constant 0 : index
    %c160 = arith.constant 160 : index
    %14 = vector.load %arg9[%c0_6, %c160] : memref<16x288xf32, #tpu.memory_space<vmem>>, vector<15x32xf32>
    tpu.vector_store %arg9[%c0_6, %c160], %13 {strides = array<i32>} : memref<16x288xf32, #tpu.memory_space<vmem>>, vector<15x32xf32>,
    %15 = vector.extract_strided_slice %1 {offsets = [2, 0], sizes = [14, 32], strides = [1, 1]} : vector<16x32xf32> to vector<14x32xf32>
    %c0_7 = arith.constant 0 : index
    %c192 = arith.constant 192 : index
    %16 = vector.load %arg9[%c0_7, %c192] : memref<16x288xf32, #tpu.memory_space<vmem>>, vector<14x32xf32>
    tpu.vector_store %arg9[%c0_7, %c192], %15 {strides = array<i32>} : memref<16x288xf32, #tpu.memory_space<vmem>>, vector<14x32xf32>,
    %17 = vector.extract_strided_slice %1 {offsets = [3, 0], sizes = [13, 32], strides = [1, 1]} : vector<16x32xf32> to vector<13x32xf32>
    %c0_8 = arith.constant 0 : index
    %c224 = arith.constant 224 : index
    %18 = vector.load %arg9[%c0_8, %c224] : memref<16x288xf32, #tpu.memory_space<vmem>>, vector<13x32xf32>
    tpu.vector_store %arg9[%c0_8, %c224], %17 {strides = array<i32>} : memref<16x288xf32, #tpu.memory_space<vmem>>, vector<13x32xf32>,
    %19 = vector.extract_strided_slice %1 {offsets = [4, 0], sizes = [12, 32], strides = [1, 1]} : vector<16x32xf32> to vector<12x32xf32>
    %c0_9 = arith.constant 0 : index
    %c256 = arith.constant 256 : index
    %20 = vector.load %arg9[%c0_9, %c256] : memref<16x288xf32, #tpu.memory_space<vmem>>, vector<12x32xf32>
    tpu.vector_store %arg9[%c0_9, %c256], %19 {strides = array<i32>} : memref<16x288xf32, #tpu.memory_space<vmem>>, vector<12x32xf32>,
    %c0_10 = arith.constant 0 : index
    %c0_11 = arith.constant 0 : index
    %21 = vector.load %arg9[%c0_10, %c0_11] : memref<16x288xf32, #tpu.memory_space<vmem>>, vector<16x288xf32>
    %c0_12 = arith.constant 0 : index
    %c0_13 = arith.constant 0 : index
    %22 = vector.load %arg2[%c0_12, %c0_13] : memref<288x64xf32, #tpu.memory_space<vmem>>, vector<288x64xf32>
    %cst_14 = arith.constant dense<0.000000e+00> : vector<16x64xf32>
    %23 = tpu.matmul %21, %22, %cst_14 {dimension_numbers = #tpu.dot_dimension_numbers<[1], [0], [0], [1], [0, 0, 1, 1], [], []>} : vector<16x288xf32>, vector<288x64xf32>, vector<16x64xf32> -> vector<16x64xf32>
    %c0_15 = arith.constant 0 : index
    %c0_16 = arith.constant 0 : index
    %24 = vector.load %arg3[%c0_15, %c0_16] : memref<1x64xf32, #tpu.memory_space<vmem>>, vector<1x64xf32>
    %25 = vector.broadcast %24 : vector<1x64xf32> to vector<16x64xf32>
    %26 = arith.addf %23, %25 : vector<16x64xf32>
    %cst_17 = arith.constant 0.000000e+00 : f32
    %27 = vector.broadcast %cst_17 : f32 to vector<16x64xf32>
    %28 = arith.maximumf %26, %27 : vector<16x64xf32>
    %c0_18 = arith.constant 0 : index
    %c0_19 = arith.constant 0 : index
    %29 = vector.load %arg4[%c0_18, %c0_19] : memref<64x32xf32, #tpu.memory_space<vmem>>, vector<64x32xf32>
    %cst_20 = arith.constant dense<0.000000e+00> : vector<16x32xf32>
    %30 = tpu.matmul %28, %29, %cst_20 {dimension_numbers = #tpu.dot_dimension_numbers<[1], [0], [0], [1], [0, 0, 1, 1], [], []>} : vector<16x64xf32>, vector<64x32xf32>, vector<16x32xf32> -> vector<16x32xf32>
    %c0_21 = arith.constant 0 : index
    %c0_22 = arith.constant 0 : index
    %31 = vector.load %arg5[%c0_21, %c0_22] : memref<1x32xf32, #tpu.memory_space<vmem>>, vector<1x32xf32>
    %32 = vector.broadcast %31 : vector<1x32xf32> to vector<16x32xf32>
    %33 = arith.addf %30, %32 : vector<16x32xf32>
    %34 = arith.addf %33, %1 : vector<16x32xf32>
    %cst_23 = arith.constant dense<0.000000e+00> : vector<16xf32>
    %35 = vector.multi_reduction <add>, %34, %cst_23 [1] : vector<16x32xf32> to vector<16xf32>
    %36 = vector.shape_cast %35 : vector<16xf32> to vector<16x1xf32>
    %cst_24 = arith.constant 3.200000e+01 : f32
    %37 = vector.broadcast %cst_24 : f32 to vector<16x1xf32>
    %38 = arith.divf %36, %37 : vector<16x1xf32>
    %39 = vector.broadcast %38 : vector<16x1xf32> to vector<16x32xf32>
    %40 = arith.subf %34, %39 : vector<16x32xf32>
    %41 = arith.mulf %40, %40 : vector<16x32xf32>
    %cst_25 = arith.constant dense<0.000000e+00> : vector<16xf32>
    %42 = vector.multi_reduction <add>, %41, %cst_25 [1] : vector<16x32xf32> to vector<16xf32>
    %43 = vector.shape_cast %42 : vector<16xf32> to vector<16x1xf32>
    %cst_26 = arith.constant 3.200000e+01 : f32
    %44 = vector.broadcast %cst_26 : f32 to vector<16x1xf32>
    %45 = arith.divf %43, %44 : vector<16x1xf32>
    %cst_27 = arith.constant 9.99999974E-6 : f32
    %46 = vector.broadcast %cst_27 : f32 to vector<16x1xf32>
    %47 = arith.addf %45, %46 : vector<16x1xf32>
    %48 = math.rsqrt %47 : vector<16x1xf32>
    %49 = vector.broadcast %48 : vector<16x1xf32> to vector<16x32xf32>
    %50 = arith.mulf %40, %49 : vector<16x32xf32>
    %c0_28 = arith.constant 0 : index
    %c0_29 = arith.constant 0 : index
    %51 = vector.load %arg6[%c0_28, %c0_29] : memref<1x32xf32, #tpu.memory_space<vmem>>, vector<1x32xf32>
    %52 = vector.broadcast %51 : vector<1x32xf32> to vector<16x32xf32>
    %53 = arith.mulf %50, %52 : vector<16x32xf32>
    %c0_30 = arith.constant 0 : index
    %c0_31 = arith.constant 0 : index
    %54 = vector.load %arg7[%c0_30, %c0_31] : memref<1x32xf32, #tpu.memory_space<vmem>>, vector<1x32xf32>
    %55 = vector.broadcast %54 : vector<1x32xf32> to vector<16x32xf32>
    %56 = arith.addf %53, %55 : vector<16x32xf32>
    %c0_32 = arith.constant 0 : index
    %c0_33 = arith.constant 0 : index
    %c0_34 = arith.constant 0 : index
    %57 = vector.load %arg8[%c0_32, %c0_33, %c0_34] : memref<1x16x32xf32, #tpu.memory_space<vmem>>, vector<1x16x32xf32>
    %58 = vector.shape_cast %57 : vector<1x16x32xf32> to vector<16x32xf32>
    %59 = vector.shape_cast %56 : vector<16x32xf32> to vector<1x16x32xf32>
    tpu.vector_store %arg8[%c0_32, %c0_33, %c0_34], %59 {strides = array<i32>} : memref<1x16x32xf32, #tpu.memory_space<vmem>>, vector<1x16x32xf32>,
    return
  }
  func.func @transform_0(%arg0: i32) -> (i32, i32, i32) {
    %c0_i32 = arith.constant 0 : i32
    %c0_i32_0 = arith.constant 0 : i32
    %c0_i32_1 = arith.constant 0 : i32
    return %arg0, %c0_i32, %c0_i32_0 : i32, i32, i32
  }
  func.func @transform_1(%arg0: i32) -> (i32, i32) {
    %c0_i32 = arith.constant 0 : i32
    %c0_i32_0 = arith.constant 0 : i32
    %c0_i32_1 = arith.constant 0 : i32
    return %c0_i32, %c0_i32_0 : i32, i32
  }
  func.func @transform_2(%arg0: i32) -> (i32, i32) {
    %c0_i32 = arith.constant 0 : i32
    %c0_i32_0 = arith.constant 0 : i32
    %c0_i32_1 = arith.constant 0 : i32
    return %c0_i32, %c0_i32_0 : i32, i32
  }
  func.func @transform_3(%arg0: i32) -> (i32, i32) {
    %c0_i32 = arith.constant 0 : i32
    %c0_i32_0 = arith.constant 0 : i32
    %c0_i32_1 = arith.constant 0 : i32
    return %c0_i32, %c0_i32_0 : i32, i32
  }
  func.func @transform_4(%arg0: i32) -> (i32, i32) {
    %c0_i32 = arith.constant 0 : i32
    %c0_i32_0 = arith.constant 0 : i32
    %c0_i32_1 = arith.constant 0 : i32
    return %c0_i32, %c0_i32_0 : i32, i32
  }
  func.func @transform_5(%arg0: i32) -> (i32, i32) {
    %c0_i32 = arith.constant 0 : i32
    %c0_i32_0 = arith.constant 0 : i32
    %c0_i32_1 = arith.constant 0 : i32
    return %c0_i32, %c0_i32_0 : i32, i32
  }
  func.func @transform_6(%arg0: i32) -> (i32, i32) {
    %c0_i32 = arith.constant 0 : i32
    %c0_i32_0 = arith.constant 0 : i32
    %c0_i32_1 = arith.constant 0 : i32
    return %c0_i32, %c0_i32_0 : i32, i32
  }
  func.func @transform_7(%arg0: i32) -> (i32, i32, i32) {
    %c0_i32 = arith.constant 0 : i32
    %c0_i32_0 = arith.constant 0 : i32
    %c0_i32_1 = arith.constant 0 : i32
    return %arg0, %c0_i32, %c0_i32_0 : i32, i32, i32
  }
}

</mosaic_0001>

<llo_original>
// kernel: positionwise_ffn.1
$region0: #{positionwise_ffn.1}
  #allocation0 [shape = 'u32[]', space=smem, size = 0x4, offset = 0x4, fixed_abs, tag = 'smem constant byte address 0x4 - core index']
  #allocation1 [shape = 'u32[144,128]{1,0:T(1,128)}', space=vmem, size = 0x12000, scoped, tag = 'internal scratch']
  #allocation2 [shape = 'f32[16,288]{1,0:T(8,128)}', space=vmem, size = 0x6000, scoped, tag = 'scratch operand']
  %s0 = inlined_call_operand.hbm [shape: f32[2,16,32], index: 0, kind: input, shape index: {}]
  %s1 = inlined_call_operand.hbm [shape: f32[288,64], index: 1, kind: input, shape index: {}]
  %s2 = inlined_call_operand.hbm [shape: f32[1,64], index: 2, kind: input, shape index: {}]
  %s3 = inlined_call_operand.hbm [shape: f32[64,32], index: 3, kind: input, shape index: {}]
  %s4 = inlined_call_operand.hbm [shape: f32[1,32], index: 4, kind: input, shape index: {}]
  %s5 = inlined_call_operand.hbm [shape: f32[1,32], index: 5, kind: input, shape index: {}]
  %s6 = inlined_call_operand.hbm [shape: f32[1,32], index: 6, kind: input, shape index: {}]
  %s7 = inlined_call_operand.hbm [shape: f32[2,16,32], index: 7, kind: output, shape index: {}]
  %s8 = sld [smem:[#allocation0]]
  $region89: #{positionwise_ffn.1} parent=0
    _
  %s10 = ssub.s32 1, %s8
  %s11 = scalar_select 0, %s10, %s8
  $region1: #{positionwise_ffn.1} parent=0
    #allocation3 [shape = 'u8[16384]{0}', space=vmem, size = 0x4000, scoped, tag = 'input window, operand 0']
    #allocation4 [shape = 's32[2]{0}', space=sflag, size = 0x8, scoped, tag = 'scoped memory for positionwise_ffn.1']
    #allocation5 [shape = 's32[2]{0}', space=sflag, size = 0x8, scoped, tag = 'scoped memory for positionwise_ffn.1']
    #allocation6 [shape = 'u8[147456]{0}', space=vmem, size = 0x24000, scoped, tag = 'input window, operand 1, single buffered']
    #allocation7 [shape = 's32[1]{0}', space=sflag, size = 0x4, scoped, tag = 'scoped memory for positionwise_ffn.1']
    #allocation8 [shape = 'u8[512]{0}', space=vmem, size = 0x400, scoped, tag = 'input window, operand 2, single buffered']
    #allocation9 [shape = 'u8[32768]{0}', space=vmem, size = 0x8000, scoped, tag = 'input window, operand 3, single buffered']
    #allocation10 [shape = 's32[1]{0}', space=sflag, size = 0x4, scoped, tag = 'scoped memory for positionwise_ffn.1']
    #allocation11 [shape = 'u8[512]{0}', space=vmem, size = 0x400, scoped, tag = 'input window, operand 4, single buffered']
    #allocation12 [shape = 'u8[512]{0}', space=vmem, size = 0x400, scoped, tag = 'input window, operand 5, single buffered']
    #allocation13 [shape = 's32[1]{0}', space=sflag, size = 0x4, scoped, tag = 'scoped memory for positionwise_ffn.1']
    #allocation14 [shape = 'u8[512]{0}', space=vmem, size = 0x400, scoped, tag = 'input window, operand 6, single buffered']
    #allocation15 [shape = 'u8[16384]{0}', space=vmem, size = 0x4000, scoped, tag = 'output window, operand 0']
    %12 = vsyncpa [#allocation4], 0
    %s13 = scalar_lea.sflag [#allocation4], 1
    %14 = vsyncpa %s13, 0
    %15 = vsyncpa [#allocation7], 0
    %16 = vsyncpa [#allocation10], 0
    %17 = vsyncpa [#allocation13], 0
    %18 = vsyncpa [#allocation5], 0
    %s19 = scalar_lea.sflag [#allocation5], 1
    %20 = vsyncpa %s19, 0
    loop: start=0, step=1, limit=4
    $region2: #{positionwise_ffn.1} parent=1 // loop_pre_header
      _
    $region3: #{positionwise_ffn.1} parent=1 // loop_header
      %s22 = sphi 0, %s26
      %p23 = scmp.ge.s32.totalorder %s22, 4
      %s32 = sphi 0, %s34
      %s35 = sphi 0, %s32
      %s36 = sphi 0, %s35
      %s52 = sphi 0, %s36
      %s56 = sphi 0, %s56
      %s58 = sphi 0, %s56
      %s59 = sphi 0, %s58
      %s73 = sphi 0, %s59
      %s77 = sphi 0, %s77
      %s79 = sphi 0, %s77
      %s80 = sphi 0, %s79
      %s94 = sphi 0, %s80
      %s98 = sphi 0, %s98
      %s100 = sphi 0, %s98
      %s101 = sphi 0, %s100
      %s115 = sphi 0, %s101
      %s119 = sphi 0, %s119
      %s121 = sphi 0, %s119
      %s122 = sphi 0, %s121
      %s136 = sphi 0, %s122
      %s140 = sphi 0, %s140
      %s142 = sphi 0, %s140
      %s143 = sphi 0, %s142
      %s157 = sphi 0, %s143
      %s161 = sphi 0, %s161
      %s163 = sphi 0, %s161
      %s164 = sphi 0, %s163
      %s178 = sphi 0, %s164
      %s184 = sphi 0, %s186
      %s187 = sphi 0, %s184
      %s188 = sphi 0, %s187
      %s204 = sphi 0, %s188
    $region4: #{positionwise_ffn.1} parent=1 // loop_header_branch
      %25 = sbr.rel (%p23) target = $region8
    $region5: #{positionwise_ffn.1} parent=1 // loop_body
      %s27 = ssub.s32 %s22, 1
      %s28 = ssub.s32 %s22, 2
      %s29 = sadd.s32 %s22, 1
      %s30 = ssub.s32 %s22, %s29
      %p31 = scmp.eq.s32.totalorder %s30, 0
      %s33 = sadd.s32 %s32, 1
      %s34 = scalar_select %p31, %s32, %s33
      %p37 = pneg %p31
      %p38 = scmp.eq.s32.totalorder %s22, 1
      %p39 = por %p37, %p38
      %p40 = scmp.ne.s32.totalorder %s32, %s35
      %p41 = scmp.eq.s32.totalorder %s22, 0
      %p42 = por %p40, %p41
      %p43 = scmp.ne.s32.totalorder %s32, %s35
      %p44 = scmp.eq.s32.totalorder %s27, 1
      %p45 = por %p43, %p44
      %p46 = scmp.ne.s32.totalorder %s35, %s36
      %p47 = scmp.eq.s32.totalorder %s27, 0
      %p48 = por %p46, %p47
      %p49 = scmp.ne.s32.totalorder %s35, %s36
      %p50 = scmp.eq.s32.totalorder %s28, 1
      %p51 = por %p49, %p50
      %p53 = scmp.ne.s32.totalorder %s36, %s52
      %p54 = scmp.eq.s32.totalorder %s28, 0
      %p55 = por %p53, %p54
      %s57 = sadd.s32 %s56, 1
      %p60 = scmp.eq.s32.totalorder %s22, 1
      %p61 = scmp.ne.s32.totalorder %s56, %s58
      %p62 = scmp.eq.s32.totalorder %s22, 0
      %p63 = por %p61, %p62
      %p64 = scmp.ne.s32.totalorder %s56, %s58
      %p65 = scmp.eq.s32.totalorder %s27, 1
      %p66 = por %p64, %p65
      %p67 = scmp.ne.s32.totalorder %s58, %s59
      %p68 = scmp.eq.s32.totalorder %s27, 0
      %p69 = por %p67, %p68
      %p70 = scmp.ne.s32.totalorder %s58, %s59
      %p71 = scmp.eq.s32.totalorder %s28, 1
      %p72 = por %p70, %p71
      %p74 = scmp.ne.s32.totalorder %s59, %s73
      %p75 = scmp.eq.s32.totalorder %s28, 0
      %p76 = por %p74, %p75
      %s78 = sadd.s32 %s77, 1
      %p81 = scmp.eq.s32.totalorder %s22, 1
      %p82 = scmp.ne.s32.totalorder %s77, %s79
      %p83 = scmp.eq.s32.totalorder %s22, 0
      %p84 = por %p82, %p83
      %p85 = scmp.ne.s32.totalorder %s77, %s79
      %p86 = scmp.eq.s32.totalorder %s27, 1
      %p87 = por %p85, %p86
      %p88 = scmp.ne.s32.totalorder %s79, %s80
      %p89 = scmp.eq.s32.totalorder %s27, 0
      %p90 = por %p88, %p89
      %p91 = scmp.ne.s32.totalorder %s79, %s80
      %p92 = scmp.eq.s32.totalorder %s28, 1
      %p93 = por %p91, %p92
      %p95 = scmp.ne.s32.totalorder %s80, %s94
      %p96 = scmp.eq.s32.totalorder %s28, 0
      %p97 = por %p95, %p96
      %s99 = sadd.s32 %s98, 1
      %p102 = scmp.eq.s32.totalorder %s22, 1
      %p103 = scmp.ne.s32.totalorder %s98, %s100
      %p104 = scmp.eq.s32.totalorder %s22, 0
      %p105 = por %p103, %p104
      %p106 = scmp.ne.s32.totalorder %s98, %s100
      %p107 = scmp.eq.s32.totalorder %s27, 1
      %p108 = por %p106, %p107
      %p109 = scmp.ne.s32.totalorder %s100, %s101
      %p110 = scmp.eq.s32.totalorder %s27, 0
      %p111 = por %p109, %p110
      %p112 = scmp.ne.s32.totalorder %s100, %s101
      %p113 = scmp.eq.s32.totalorder %s28, 1
      %p114 = por %p112, %p113
      %p116 = scmp.ne.s32.totalorder %s101, %s115
      %p117 = scmp.eq.s32.totalorder %s28, 0
      %p118 = por %p116, %p117
      %s120 = sadd.s32 %s119, 1
      %p123 = scmp.eq.s32.totalorder %s22, 1
      %p124 = scmp.ne.s32.totalorder %s119, %s121
      %p125 = scmp.eq.s32.totalorder %s22, 0
      %p126 = por %p124, %p125
      %p127 = scmp.ne.s32.totalorder %s119, %s121
      %p128 = scmp.eq.s32.totalorder %s27, 1
      %p129 = por %p127, %p128
      %p130 = scmp.ne.s32.totalorder %s121, %s122
      %p131 = scmp.eq.s32.totalorder %s27, 0
      %p132 = por %p130, %p131
      %p133 = scmp.ne.s32.totalorder %s121, %s122
      %p134 = scmp.eq.s32.totalorder %s28, 1
      %p135 = por %p133, %p134
      %p137 = scmp.ne.s32.totalorder %s122, %s136
      %p138 = scmp.eq.s32.totalorder %s28, 0
      %p139 = por %p137, %p138
      %s141 = sadd.s32 %s140, 1
      %p144 = scmp.eq.s32.totalorder %s22, 1
      %p145 = scmp.ne.s32.totalorder %s140, %s142
      %p146 = scmp.eq.s32.totalorder %s22, 0
      %p147 = por %p145, %p146
      %p148 = scmp.ne.s32.totalorder %s140, %s142
      %p149 = scmp.eq.s32.totalorder %s27, 1
      %p150 = por %p148, %p149
      %p151 = scmp.ne.s32.totalorder %s142, %s143
      %p152 = scmp.eq.s32.totalorder %s27, 0
      %p153 = por %p151, %p152
      %p154 = scmp.ne.s32.totalorder %s142, %s143
      %p155 = scmp.eq.s32.totalorder %s28, 1
      %p156 = por %p154, %p155
      %p158 = scmp.ne.s32.totalorder %s143, %s157
      %p159 = scmp.eq.s32.totalorder %s28, 0
      %p160 = por %p158, %p159
      %s162 = sadd.s32 %s161, 1
      %p165 = scmp.eq.s32.totalorder %s22, 1
      %p166 = scmp.ne.s32.totalorder %s161, %s163
      %p167 = scmp.eq.s32.totalorder %s22, 0
      %p168 = por %p166, %p167
      %p169 = scmp.ne.s32.totalorder %s161, %s163
      %p170 = scmp.eq.s32.totalorder %s27, 1
      %p171 = por %p169, %p170
      %p172 = scmp.ne.s32.totalorder %s163, %s164
      %p173 = scmp.eq.s32.totalorder %s27, 0
      %p174 = por %p172, %p173
      %p175 = scmp.ne.s32.totalorder %s163, %s164
      %p176 = scmp.eq.s32.totalorder %s28, 1
      %p177 = por %p175, %p176
      %p179 = scmp.ne.s32.totalorder %s164, %s178
      %p180 = scmp.eq.s32.totalorder %s28, 0
      %p181 = por %p179, %p180
      %s182 = ssub.s32 %s22, %s29
      %p183 = scmp.eq.s32.totalorder %s182, 0
      %s185 = sadd.s32 %s184, 1
      %s186 = scalar_select %p183, %s184, %s185
      %p189 = pneg %p183
      %p190 = scmp.eq.s32.totalorder %s22, 1
      %p191 = por %p189, %p190
      %p192 = scmp.ne.s32.totalorder %s184, %s187
      %p193 = scmp.eq.s32.totalorder %s22, 0
      %p194 = por %p192, %p193
      %p195 = scmp.ne.s32.totalorder %s184, %s187
      %p196 = scmp.eq.s32.totalorder %s27, 1
      %p197 = por %p195, %p196
      %p198 = scmp.ne.s32.totalorder %s187, %s188
      %p199 = scmp.eq.s32.totalorder %s27, 0
      %p200 = por %p198, %p199
      %p201 = scmp.ne.s32.totalorder %s187, %s188
      %p202 = scmp.eq.s32.totalorder %s28, 1
      %p203 = por %p201, %p202
      %p205 = scmp.ne.s32.totalorder %s188, %s204
      %p206 = scmp.eq.s32.totalorder %s28, 0
      %p207 = por %p205, %p206
      %p208 = scmp.le.s32.totalorder 1, %s22
      %p209 = scmp.lt.s32.totalorder %s22, 3
      %p210 = pnand %p208, %p209
      %p211 = pneg %p210
      // Predicated region
      $region9: #{positionwise_ffn.1} parent=5 // pred_check
        _
      $region10: #{positionwise_ffn.1} parent=5 // pred_check_branch
        %213 = sbr.rel (%p210) target = $region12
      $region11: #{positionwise_ffn.1} parent=5 // pred_region
        %s214 = ssub.s32 %s22, 1
        // Predicated region
        $region13: #{positionwise_ffn.1} parent=11 // pred_check
          %p215 = pneg %p69
        $region14: #{positionwise_ffn.1} parent=11 // pred_check_branch
          %217 = sbr.rel (%p215) target = $region16
        $region15: #{positionwise_ffn.1} parent=11 // pred_region
          %s219 = ssub.s32 4608, 4608
          %220 = vsyncadd [#allocation7], %s219
          %s221 = sshll.u32 [#allocation6], 4
          %s222 = int_to_ptr.vmem [resolvable:$true] %s221
          %227 = dma.hbm_to_vmem [thread:$0]  %s1, 4608, %s222, [#allocation7], 128, 128, 8
        $region16: #{positionwise_ffn.1} parent=11 // pred_fallthru
          _
        // Predicated region
        $region17: #{positionwise_ffn.1} parent=11 // pred_check
          %p228 = pneg %p90
        $region18: #{positionwise_ffn.1} parent=11 // pred_check_branch
          %230 = sbr.rel (%p228) target = $region20
        $region19: #{positionwise_ffn.1} parent=11 // pred_region
          %s232 = ssub.s32 16, 16
          %233 = vsyncadd [#allocation7], %s232
          %s235 = sshll.u32 [#allocation8], 4
          %s236 = int_to_ptr.vmem [resolvable:$true] %s235
          %238 = dma.hbm_to_vmem [thread:$0]  %s2, 16, %s236, [#allocation7]
        $region20: #{positionwise_ffn.1} parent=11 // pred_fallthru
          _
        // Predicated region
        $region21: #{positionwise_ffn.1} parent=11 // pred_check
          %p239 = pneg %p111
        $region22: #{positionwise_ffn.1} parent=11 // pred_check_branch
          %241 = sbr.rel (%p239) target = $region24
        $region23: #{positionwise_ffn.1} parent=11 // pred_region
          %s243 = ssub.s32 1024, 1024
          %244 = vsyncadd [#allocation10], %s243
          %s245 = sshll.u32 [#allocation9], 4
          %s246 = int_to_ptr.vmem [resolvable:$true] %s245
          %251 = dma.hbm_to_vmem [thread:$0]  %s3, 1024, %s246, [#allocation10], 128, 128, 8
        $region24: #{positionwise_ffn.1} parent=11 // pred_fallthru
          _
        // Predicated region
        $region25: #{positionwise_ffn.1} parent=11 // pred_check
          %p252 = pneg %p132
        $region26: #{positionwise_ffn.1} parent=11 // pred_check_branch
          %254 = sbr.rel (%p252) target = $region28
        $region27: #{positionwise_ffn.1} parent=11 // pred_region
          %s256 = ssub.s32 16, 16
          %257 = vsyncadd [#allocation10], %s256
          %s259 = sshll.u32 [#allocation11], 4
          %s260 = int_to_ptr.vmem [resolvable:$true] %s259
          %262 = dma.hbm_to_vmem [thread:$0]  %s4, 16, %s260, [#allocation10]
        $region28: #{positionwise_ffn.1} parent=11 // pred_fallthru
          _
        // Predicated region
        $region29: #{positionwise_ffn.1} parent=11 // pred_check
          %p263 = pneg %p153
        $region30: #{positionwise_ffn.1} parent=11 // pred_check_branch
          %265 = sbr.rel (%p263) target = $region32
        $region31: #{positionwise_ffn.1} parent=11 // pred_region
          %s267 = ssub.s32 16, 16
          %268 = vsyncadd [#allocation13], %s267
          %s270 = sshll.u32 [#allocation12], 4
          %s271 = int_to_ptr.vmem [resolvable:$true] %s270
          %273 = dma.hbm_to_vmem [thread:$0]  %s5, 16, %s271, [#allocation13]
        $region32: #{positionwise_ffn.1} parent=11 // pred_fallthru
          _
        // Predicated region
        $region33: #{positionwise_ffn.1} parent=11 // pred_check
          %p274 = pneg %p174
        $region34: #{positionwise_ffn.1} parent=11 // pred_check_branch
          %276 = sbr.rel (%p274) target = $region36
        $region35: #{positionwise_ffn.1} parent=11 // pred_region
          %s278 = ssub.s32 16, 16
          %279 = vsyncadd [#allocation13], %s278
          %s281 = sshll.u32 [#allocation14], 4
          %s282 = int_to_ptr.vmem [resolvable:$true] %s281
          %284 = dma.hbm_to_vmem [thread:$0]  %s6, 16, %s282, [#allocation13]
        $region36: #{positionwise_ffn.1} parent=11 // pred_fallthru
          _
      $region12: #{positionwise_ffn.1} parent=5 // pred_fallthru
        _
      %p285 = scmp.lt.s32.totalorder %s22, 2
      // Predicated region
      $region37: #{positionwise_ffn.1} parent=5 // pred_check
        %p286 = pneg %p285
      $region38: #{positionwise_ffn.1} parent=5 // pred_check_branch
        %288 = sbr.rel (%p286) target = $region40
      $region39: #{positionwise_ffn.1} parent=5 // pred_region
        // Predicated region
        $region41: #{positionwise_ffn.1} parent=39 // pred_check
          %p289 = pneg %p42
        $region42: #{positionwise_ffn.1} parent=39 // pred_check_branch
          %291 = sbr.rel (%p289) target = $region44
        $region43: #{positionwise_ffn.1} parent=39 // pred_region
          %s292 = sand.u32 %s32, 1
          %s293 = scalar_lea.sflag [#allocation4], %s292
          %s294 = sand.u32 %s32, 1
          %s295 = smul.addr %s294, 16
          %s296 = scalar_lea.vmem [#allocation3], %s295
          %s298 = ssub.s32 256, 256
          %299 = vsyncadd %s293, %s298
          %s300 = smul.addr %s22, 2
          %s301 = smul.addr %s300, 128
          %s302 = scalar_lea.hbm %s0, %s301
          %s303 = sshll.u32 %s296, 4
          %s304 = int_to_ptr.vmem [resolvable:$true] %s303
          %309 = dma.hbm_to_vmem [thread:$0]  %s302, 256, %s304, %s293, 128, 128, 8
        $region44: #{positionwise_ffn.1} parent=39 // pred_fallthru
          _
      $region40: #{positionwise_ffn.1} parent=5 // pred_fallthru
        _
      %p310 = scmp.le.s32.totalorder 1, %s22
      %p311 = scmp.lt.s32.totalorder %s22, 3
      %p312 = pnand %p310, %p311
      %p313 = pneg %p312
      // Predicated region
      $region45: #{positionwise_ffn.1} parent=5 // pred_check
        _
      $region46: #{positionwise_ffn.1} parent=5 // pred_check_branch
        %315 = sbr.rel (%p312) target = $region48
      $region47: #{positionwise_ffn.1} parent=5 // pred_region
        %s316 = ssub.s32 %s22, 1
        %s317 = sand.u32 %s35, 1
        %s318 = scalar_lea.sflag [#allocation4], %s317
        %s319 = sand.u32 %s35, 1
        %s320 = smul.addr %s319, 16
        %s321 = scalar_lea.vmem [#allocation3], %s320
        // Predicated region
        $region49: #{positionwise_ffn.1} parent=47 // pred_check
          %p322 = pneg %p48
        $region50: #{positionwise_ffn.1} parent=47 // pred_check_branch
          %324 = sbr.rel (%p322) target = $region52
        $region51: #{positionwise_ffn.1} parent=47 // pred_region
          %325 = dma.done %s318, 256
        $region52: #{positionwise_ffn.1} parent=47 // pred_fallthru
          _
        // Predicated region
        $region53: #{positionwise_ffn.1} parent=47 // pred_check
          %p326 = pneg %p69
        $region54: #{positionwise_ffn.1} parent=47 // pred_check_branch
          %328 = sbr.rel (%p326) target = $region56
        $region55: #{positionwise_ffn.1} parent=47 // pred_region
          %329 = dma.done [#allocation7], 4608
        $region56: #{positionwise_ffn.1} parent=47 // pred_fallthru
          _
        // Predicated region
        $region57: #{positionwise_ffn.1} parent=47 // pred_check
          %p330 = pneg %p90
        $region58: #{positionwise_ffn.1} parent=47 // pred_check_branch
          %332 = sbr.rel (%p330) target = $region60
        $region59: #{positionwise_ffn.1} parent=47 // pred_region
          %333 = dma.done [#allocation7], 16
        $region60: #{positionwise_ffn.1} parent=47 // pred_fallthru
          _
        // Predicated region
        $region61: #{positionwise_ffn.1} parent=47 // pred_check
          %p334 = pneg %p111
        $region62: #{positionwise_ffn.1} parent=47 // pred_check_branch
          %336 = sbr.rel (%p334) target = $region64
        $region63: #{positionwise_ffn.1} parent=47 // pred_region
          %337 = dma.done [#allocation10], 1024
        $region64: #{positionwise_ffn.1} parent=47 // pred_fallthru
          _
        // Predicated region
        $region65: #{positionwise_ffn.1} parent=47 // pred_check
          %p338 = pneg %p132
        $region66: #{positionwise_ffn.1} parent=47 // pred_check_branch
          %340 = sbr.rel (%p338) target = $region68
        $region67: #{positionwise_ffn.1} parent=47 // pred_region
          %341 = dma.done [#allocation10], 16
        $region68: #{positionwise_ffn.1} parent=47 // pred_fallthru
          _
        // Predicated region
        $region69: #{positionwise_ffn.1} parent=47 // pred_check
          %p342 = pneg %p153
        $region70: #{positionwise_ffn.1} parent=47 // pred_check_branch
          %344 = sbr.rel (%p342) target = $region72
        $region71: #{positionwise_ffn.1} parent=47 // pred_region
          %345 = dma.done [#allocation13], 16
        $region72: #{positionwise_ffn.1} parent=47 // pred_fallthru
          _
        // Predicated region
        $region73: #{positionwise_ffn.1} parent=47 // pred_check
          %p346 = pneg %p174
        $region74: #{positionwise_ffn.1} parent=47 // pred_check_branch
          %348 = sbr.rel (%p346) target = $region76
        $region75: #{positionwise_ffn.1} parent=47 // pred_region
          %349 = dma.done [#allocation13], 16
        $region76: #{positionwise_ffn.1} parent=47 // pred_fallthru
          _
        %s350 = sand.u32 %s35, 1
        %s351 = scalar_lea.sflag [#allocation4], %s350
        %s352 = sand.u32 %s35, 1
        %s353 = smul.addr %s352, 16
        %s354 = scalar_lea.vmem [#allocation3], %s353
        %p355 = pneg %p48
        %p356 = pneg %p45
        %p357 = pneg %p69
        %p358 = pneg %p66
        %p359 = pneg %p90
        %p360 = pneg %p87
        %p361 = pneg %p111
        %p362 = pneg %p108
        %p363 = pneg %p132
        %p364 = pneg %p129
        %p365 = pneg %p153
        %p366 = pneg %p150
        %p367 = pneg %p174
        %p368 = pneg %p171
        %p369 = pneg %p200
        %p370 = pneg %p197
        %s371 = sand.u32 %s187, 1
        %s372 = scalar_lea.sflag [#allocation5], %s371
        %s373 = sand.u32 %s187, 1
        %s374 = smul.addr %s373, 16
        %s375 = scalar_lea.vmem [#allocation15], %s374
        %v376 = vld [vmem:[%s321] sm:$0xff]
        %v377 = vld [vmem:[%s321 + $0x8] sm:$0xff]
        %378 = vst [vmem:[#allocation2] sm:$0xff] 0.0
        %379 = vst [vmem:[#allocation2 + $0x8] sm:$0xff] 0.0
        %vm380 = vcmask 261120
        %381 = vst.msk [vmem:[#allocation2 + $0x10] sm:$0xff] %vm380, 0.0
        %382 = vst [vmem:[#allocation2 + $0x18] sm:$0xff] 0.0
        %383 = vst [vmem:[#allocation2 + $0x20] sm:$0xff] 0.0
        %384 = vst.msk [vmem:[#allocation2 + $0x28] sm:$0xff] %vm380, 0.0
        %vm387 = vcmask 1043456
        %v388 = vrot.slane %v376, 4
        %v389 = vrot.slane %v377, 4
        %v390 = vsel %vm387, %v388, %v389
        %vm393 = vcmask 261124
        %394 = vst.msk [vmem:[#allocation2] sm:$0xf0] %vm393, %v388
        %395 = vst.msk [vmem:[#allocation2 + $0x18] sm:$0xff] %vm380, %v390
        %vm396 = vcmask 1042432
        %v397 = vrot.slane %v376, 5
        %v398 = vrot.slane %v377, 5
        %v399 = vsel %vm396, %v397, %v398
        %400 = vrot.lane.b32.xlu0 %v397, 32
        %v401 = vpop.permute.xlu0 %400
        %402 = vrot.lane.b32.xlu0 %v399, 32
        %v403 = vpop.permute.xlu0 %402
        %vm406 = vcmask 523523
        %407 = vst.msk [vmem:[#allocation2] sm:$0xf8] %vm406, %v401
        %vm408 = vcmask 523520
        %409 = vst.msk [vmem:[#allocation2 + $0x18] sm:$0xff] %vm408, %v403
        %vm410 = vcmask 1041408
        %v411 = vrot.slane %v376, 6
        %v412 = vrot.slane %v377, 6
        %v413 = vsel %vm410, %v411, %v412
        %414 = vrot.lane.b32.xlu0 %v411, 64
        %v415 = vpop.permute.xlu0 %414
        %416 = vrot.lane.b32.xlu0 %v413, 64
        %v417 = vpop.permute.xlu0 %416
        %vm420 = vcmask 785922
        %421 = vst.msk [vmem:[#allocation2] sm:$0xfc] %vm420, %v415
        %vm422 = vcmask 785920
        %423 = vst.msk [vmem:[#allocation2 + $0x18] sm:$0xff] %vm422, %v417
        %vm424 = vcmask 1040384
        %v425 = vrot.slane %v376, 7
        %v426 = vrot.slane %v377, 7
        %v427 = vsel %vm424, %v425, %v426
        %428 = vrot.lane.b32.xlu0 %v425, 96
        %v429 = vpop.permute.xlu0 %428
        %430 = vrot.lane.b32.xlu0 %v427, 96
        %v431 = vpop.permute.xlu0 %430
        %vm434 = vcmask 1048321
        %435 = vst.msk [vmem:[#allocation2] sm:$0xfe] %vm434, %v429
        %vm436 = vcmask 1048320
        %437 = vst.msk [vmem:[#allocation2 + $0x18] sm:$0xff] %vm436, %v431
        %438 = vst.msk [vmem:[#allocation2 + $0x8] sm:$0xff] %vm380, %v376
        %439 = vst.msk [vmem:[#allocation2 + $0x20] sm:$0xff] %vm380, %v377
        %vm440 = vcmask 1046528
        %v441 = vrot.slane %v376, 1
        %v442 = vrot.slane %v377, 1
        %v443 = vsel %vm440, %v441, %v442
        %444 = vrot.lane.b32.xlu0 %v443, 32
        %v445 = vpop.permute.xlu0 %444
        %446 = vrot.lane.b32.xlu0 %v442, 32
        %v447 = vpop.permute.xlu0 %446
        %450 = vst.msk [vmem:[#allocation2 + $0x8] sm:$0xff] %vm408, %v445
        %vm451 = vcmask 522496
        %452 = vst.msk [vmem:[#allocation2 + $0x20] sm:$0x7f] %vm451, %v447
        %vm453 = vcmask 1045504
        %v454 = vrot.slane %v376, 2
        %v455 = vrot.slane %v377, 2
        %v456 = vsel %vm453, %v454, %v455
        %457 = vrot.lane.b32.xlu0 %v456, 64
        %v458 = vpop.permute.xlu0 %457
        %459 = vrot.lane.b32.xlu0 %v455, 64
        %v460 = vpop.permute.xlu0 %459
        %463 = vst.msk [vmem:[#allocation2 + $0x8] sm:$0xff] %vm422, %v458
        %vm464 = vcmask 783872
        %465 = vst.msk [vmem:[#allocation2 + $0x20] sm:$0x3f] %vm464, %v460
        %vm466 = vcmask 1044480
        %v467 = vrot.slane %v376, 3
        %v468 = vrot.slane %v377, 3
        %v469 = vsel %vm466, %v467, %v468
        %470 = vrot.lane.b32.xlu0 %v469, 96
        %v471 = vpop.permute.xlu0 %470
        %472 = vrot.lane.b32.xlu0 %v468, 96
        %v473 = vpop.permute.xlu0 %472
        %476 = vst.msk [vmem:[#allocation2 + $0x8] sm:$0xff] %vm436, %v471
        %vm477 = vcmask 1045248
        %478 = vst.msk [vmem:[#allocation2 + $0x20] sm:$0x1f] %vm477, %v473
        %480 = vst.msk [vmem:[#allocation2 + $0x10] sm:$0xff] %vm380, %v390
        %vm481 = vcmask 257024
        %482 = vst.msk [vmem:[#allocation2 + $0x28] sm:$0xf] %vm481, %v389
        %v483 = vld [vmem:[#allocation2] sm:$0xff]
        %v484 = vld [vmem:[#allocation2 + $0x8] sm:$0xff]
        %v485 = vld [vmem:[#allocation2 + $0x10] sm:$0xff]
        %v486 = vld [vmem:[#allocation2 + $0x18] sm:$0xff]
        %v487 = vld [vmem:[#allocation2 + $0x20] sm:$0xff]
        %v488 = vld [vmem:[#allocation2 + $0x28] sm:$0xff]
        %v489 = vld [vmem:[#allocation6] sm:$0xff]
        %v490 = vld [vmem:[#allocation6 + $0x8] sm:$0xff]
        %v491 = vld [vmem:[#allocation6 + $0x10] sm:$0xff]
        %v492 = vld [vmem:[#allocation6 + $0x18] sm:$0xff]
        %v493 = vld [vmem:[#allocation6 + $0x20] sm:$0xff]
        %v494 = vld [vmem:[#allocation6 + $0x28] sm:$0xff]
        %v495 = vld [vmem:[#allocation6 + $0x30] sm:$0xff]
        %v496 = vld [vmem:[#allocation6 + $0x38] sm:$0xff]
        %v497 = vld [vmem:[#allocation6 + $0x40] sm:$0xff]
        %v498 = vld [vmem:[#allocation6 + $0x48] sm:$0xff]
        %v499 = vld [vmem:[#allocation6 + $0x50] sm:$0xff]
        %v500 = vld [vmem:[#allocation6 + $0x58] sm:$0xff]
        %v501 = vld [vmem:[#allocation6 + $0x60] sm:$0xff]
        %v502 = vld [vmem:[#allocation6 + $0x68] sm:$0xff]
        %v503 = vld [vmem:[#allocation6 + $0x70] sm:$0xff]
        %v504 = vld [vmem:[#allocation6 + $0x78] sm:$0xff]
        %v505 = vld [vmem:[#allocation6 + $0x80] sm:$0xff]
        %v506 = vld [vmem:[#allocation6 + $0x88] sm:$0xff]
        %v507 = vld [vmem:[#allocation6 + $0x90] sm:$0xff]
        %v508 = vld [vmem:[#allocation6 + $0x98] sm:$0xff]
        %v509 = vld [vmem:[#allocation6 + $0xa0] sm:$0xff]
        %v510 = vld [vmem:[#allocation6 + $0xa8] sm:$0xff]
        %v511 = vld [vmem:[#allocation6 + $0xb0] sm:$0xff]
        %v512 = vld [vmem:[#allocation6 + $0xb8] sm:$0xff]
        %v513 = vld [vmem:[#allocation6 + $0xc0] sm:$0xff]
        %v514 = vld [vmem:[#allocation6 + $0xc8] sm:$0xff]
        %v515 = vld [vmem:[#allocation6 + $0xd0] sm:$0xff]
        %v516 = vld [vmem:[#allocation6 + $0xd8] sm:$0xff]
        %v517 = vld [vmem:[#allocation6 + $0xe0] sm:$0xff]
        %v518 = vld [vmem:[#allocation6 + $0xe8] sm:$0xff]
        %v519 = vld [vmem:[#allocation6 + $0xf0] sm:$0xff]
        %v520 = vld [vmem:[#allocation6 + $0xf8] sm:$0xff]
        %v521 = vld [vmem:[#allocation6 + $0x100] sm:$0xff]
        %v522 = vld [vmem:[#allocation6 + $0x108] sm:$0xff]
        %v523 = vld [vmem:[#allocation6 + $0x110] sm:$0xff]
        %v524 = vld [vmem:[#allocation6 + $0x118] sm:$0xff]
        %v525 = vld [vmem:[#allocation8] sm:$0x1]
        %v527 = vlaneseq
        %v528 = vshrl.u32 %v527, 7
        %v529 = vsub.s32 0, %v528
        %v530 = vrot.slane %v525, %v529
        %v533 = vsel %vm380, %v485, 0
        %v536 = vsel %vm380, %v488, 0
        %538 = vmatprep.subr.mxu0 0.0
        %539 = vmatpush1.msra.mxu0 %v489
        %540 = vmatprep.subr.mxu0 0.0
        %541 = vmatpush1.msra.mxu0 %v490
        %542 = vmatprep.subr.mxu0 0.0
        %543 = vmatpush1.msra.mxu0 %v491
        %544 = vmatprep.subr.mxu0 0.0
        %545 = vmatpush1.msra.mxu0 %v492
        %546 = vmatprep.subr.mxu0 0.0
        %547 = vmatpush1.msra.mxu0 %v493
        %548 = vmatprep.subr.mxu0 0.0
        %549 = vmatpush1.msra.mxu0 %v494
        %550 = vmatprep.subr.mxu0 0.0
        %551 = vmatpush1.msra.mxu0 %v495
        %552 = vmatprep.subr.mxu0 0.0
        %553 = vmatpush1.msra.mxu0 %v496
        %554 = vmatprep.subr.mxu0 0.0
        %555 = vmatpush1.msra.mxu0 %v497
        %556 = vmatprep.subr.mxu0 0.0
        %557 = vmatpush1.msra.mxu0 %v498
        %558 = vmatprep.subr.mxu0 0.0
        %559 = vmatpush1.msra.mxu0 %v499
        %560 = vmatprep.subr.mxu0 0.0
        %561 = vmatpush1.msra.mxu0 %v500
        %562 = vmatprep.subr.mxu0 0.0
        %563 = vmatpush1.msra.mxu0 %v501
        %564 = vmatprep.subr.mxu0 0.0
        %565 = vmatpush1.msra.mxu0 %v502
        %566 = vmatprep.subr.mxu0 0.0
        %567 = vmatpush1.msra.mxu0 %v503
        %568 = vmatprep.subr.mxu0 0.0
        %569 = vmatpush1.msra.mxu0 %v504
        %570 = vmatprep.subr.mxu0 0.0
        %571 = vmatpush1.msra.mxu0 %v505
        %572 = vmatprep.subr.mxu0 0.0
        %573 = vmatpush1.msra.mxu0 %v506
        %574 = vmatprep.subr.mxu0 0.0
        %575 = vmatpush1.msra.mxu0 %v507
        %576 = vmatprep.subr.mxu0 0.0
        %577 = vmatpush1.msra.mxu0 %v508
        %578 = vmatprep.subr.mxu0 0.0
        %579 = vmatpush1.msra.mxu0 %v509
        %580 = vmatprep.subr.mxu0 0.0
        %581 = vmatpush1.msra.mxu0 %v510
        %582 = vmatprep.subr.mxu0 0.0
        %583 = vmatpush1.msra.mxu0 %v511
        %584 = vmatprep.subr.mxu0 0.0
        %585 = vmatpush1.msra.mxu0 %v512
        %586 = vmatprep.subr.mxu0 0.0
        %587 = vmatpush1.msra.mxu0 %v513
        %588 = vmatprep.subr.mxu0 0.0
        %589 = vmatpush1.msra.mxu0 %v514
        %590 = vmatprep.subr.mxu0 0.0
        %591 = vmatpush1.msra.mxu0 %v515
        %592 = vmatprep.subr.mxu0 0.0
        %593 = vmatpush1.msra.mxu0 %v516
        %594 = vmatprep.subr.mxu0 0.0
        %595 = vmatpush1.msra.mxu0 %v517
        %596 = vmatprep.subr.mxu0 0.0
        %597 = vmatpush1.msra.mxu0 %v518
        %598 = vmatprep.subr.mxu0 0.0
        %599 = vmatpush1.msra.mxu0 %v519
        %600 = vmatprep.subr.mxu0 0.0
        %601 = vmatpush1.msra.mxu0 %v520
        %602 = vmatprep.mubr.f32.mxu0 %v484
        %603 = vmatmul.mubr.f32.gmra.mrb[0].mxu0 %v483
        %v604 = vpop.f32.mrb[0].mxu0
        %v605 = vadd.f32 %v530, %v604
        %v606 = vpop.f32.mrb[0].mxu0
        %607 = vmatprep.mubr.f32.mxu0 %v487
        %608 = vmatmul.mubr.f32.gmra.mrb[0].mxu0 %v486
        %v609 = vpop.f32.mrb[0].mxu0
        %v610 = vadd.f32 %v530, %v609
        %v611 = vpop.f32.mrb[0].mxu0
        %612 = vdwg.mxu0
        %613 = vmatprep.subr.mxu0 0.0
        %614 = vmatpush1.msra.mxu0 %v521
        %615 = vmatprep.subr.mxu0 0.0
        %616 = vmatpush1.msra.mxu0 %v522
        %617 = vmatprep.subr.mxu0 0.0
        %618 = vmatpush1.msra.mxu0 %v523
        %619 = vmatprep.subr.mxu0 0.0
        %620 = vmatpush1.msra.mxu0 %v524
        %621 = vmatprep.subr.mxu0 0.0
        %622 = vmatpush1.msra.mxu0 0.0
        %623 = vmatprep.subr.mxu0 0.0
        %624 = vmatpush1.msra.mxu0 0.0
        %625 = vmatprep.subr.mxu0 0.0
        %626 = vmatpush1.msra.mxu0 0.0
        %627 = vmatprep.subr.mxu0 0.0
        %628 = vmatpush1.msra.mxu0 0.0
        %629 = vmatprep.subr.mxu0 0.0
        %630 = vmatpush1.msra.mxu0 0.0
        %631 = vmatprep.subr.mxu0 0.0
        %632 = vmatpush1.msra.mxu0 0.0
        %633 = vmatprep.subr.mxu0 0.0
        %634 = vmatpush1.msra.mxu0 0.0
        %635 = vmatprep.subr.mxu0 0.0
        %636 = vmatpush1.msra.mxu0 0.0
        %637 = vmatprep.subr.mxu0 0.0
        %638 = vmatpush1.msra.mxu0 0.0
        %639 = vmatprep.subr.mxu0 0.0
        %640 = vmatpush1.msra.mxu0 0.0
        %641 = vmatprep.subr.mxu0 0.0
        %642 = vmatpush1.msra.mxu0 0.0
        %643 = vmatprep.subr.mxu0 0.0
        %644 = vmatpush1.msra.mxu0 0.0
        %645 = vmatprep.subr.mxu0 0.0
        %646 = vmatpush1.msra.mxu0 0.0
        %647 = vmatprep.subr.mxu0 0.0
        %648 = vmatpush1.msra.mxu0 0.0
        %649 = vmatprep.subr.mxu0 0.0
        %650 = vmatpush1.msra.mxu0 0.0
        %651 = vmatprep.subr.mxu0 0.0
        %652 = vmatpush1.msra.mxu0 0.0
        %653 = vmatprep.subr.mxu0 0.0
        %654 = vmatpush1.msra.mxu0 0.0
        %655 = vmatprep.subr.mxu0 0.0
        %656 = vmatpush1.msra.mxu0 0.0
        %657 = vmatprep.subr.mxu0 0.0
        %658 = vmatpush1.msra.mxu0 0.0
        %659 = vmatprep.subr.mxu0 0.0
        %660 = vmatpush1.msra.mxu0 0.0
        %661 = vmatprep.subr.mxu0 0.0
        %662 = vmatpush1.msra.mxu0 0.0
        %663 = vmatprep.subr.mxu0 0.0
        %664 = vmatpush1.msra.mxu0 0.0
        %665 = vmatprep.subr.mxu0 0.0
        %666 = vmatpush1.msra.mxu0 0.0
        %667 = vmatprep.subr.mxu0 0.0
        %668 = vmatpush1.msra.mxu0 0.0
        %669 = vmatprep.subr.mxu0 0.0
        %670 = vmatpush1.msra.mxu0 0.0
        %671 = vmatprep.subr.mxu0 0.0
        %672 = vmatpush1.msra.mxu0 0.0
        %673 = vmatprep.subr.mxu0 0.0
        %674 = vmatpush1.msra.mxu0 0.0
        %675 = vmatprep.subr.mxu0 0.0
        %676 = vmatpush1.msra.mxu0 0.0
        %677 = vmatprep.mubr.f32.mxu0 0.0
        %678 = vmatmul.mubr.f32.gmra.mrb[0].mxu0 %v533
        %v679 = vpop.f32.mrb[0].mxu0
        %v680 = vadd.f32 %v605, %v679
        %v681 = vpop.f32.mrb[0].mxu0
        %682 = vmatprep.mubr.f32.mxu0 0.0
        %683 = vmatmul.mubr.f32.gmra.mrb[0].mxu0 %v536
        %v684 = vpop.f32.mrb[0].mxu0
        %v685 = vadd.f32 %v610, %v684
        %v686 = vpop.f32.mrb[0].mxu0
        %687 = vdwg.mxu0
        %v688 = vmax.f32 %v680, 0.0
        %v689 = vmax.f32 %v685, 0.0
        %v690 = vld [vmem:[#allocation9] sm:$0xff]
        %v691 = vld [vmem:[#allocation9 + $0x8] sm:$0xff]
        %v692 = vld [vmem:[#allocation9 + $0x10] sm:$0xff]
        %v693 = vld [vmem:[#allocation9 + $0x18] sm:$0xff]
        %v694 = vld [vmem:[#allocation9 + $0x20] sm:$0xff]
        %v695 = vld [vmem:[#allocation9 + $0x28] sm:$0xff]
        %v696 = vld [vmem:[#allocation9 + $0x30] sm:$0xff]
        %v697 = vld [vmem:[#allocation9 + $0x38] sm:$0xff]
        %v698 = vld [vmem:[#allocation11] sm:$0x1]
        %v700 = vlaneseq
        %v701 = vshrl.u32 %v700, 7
        %v702 = vsub.s32 0, %v701
        %v703 = vrot.slane %v698, %v702
        %vm705 = vcmask 523264
        %v707 = vsel %vm705, %v688, 0
        %v710 = vsel %vm705, %v689, 0
        %712 = vmatprep.subr.mxu0 0.0
        %713 = vmatpush1.msra.mxu0 %v690
        %714 = vmatprep.subr.mxu0 0.0
        %715 = vmatpush1.msra.mxu0 %v691
        %716 = vmatprep.subr.mxu0 0.0
        %717 = vmatpush1.msra.mxu0 %v692
        %718 = vmatprep.subr.mxu0 0.0
        %719 = vmatpush1.msra.mxu0 %v693
        %720 = vmatprep.subr.mxu0 0.0
        %721 = vmatpush1.msra.mxu0 %v694
        %722 = vmatprep.subr.mxu0 0.0
        %723 = vmatpush1.msra.mxu0 %v695
        %724 = vmatprep.subr.mxu0 0.0
        %725 = vmatpush1.msra.mxu0 %v696
        %726 = vmatprep.subr.mxu0 0.0
        %727 = vmatpush1.msra.mxu0 %v697
        %728 = vmatprep.subr.mxu0 0.0
        %729 = vmatpush1.msra.mxu0 0.0
        %730 = vmatprep.subr.mxu0 0.0
        %731 = vmatpush1.msra.mxu0 0.0
        %732 = vmatprep.subr.mxu0 0.0
        %733 = vmatpush1.msra.mxu0 0.0
        %734 = vmatprep.subr.mxu0 0.0
        %735 = vmatpush1.msra.mxu0 0.0
        %736 = vmatprep.subr.mxu0 0.0
        %737 = vmatpush1.msra.mxu0 0.0
        %738 = vmatprep.subr.mxu0 0.0
        %739 = vmatpush1.msra.mxu0 0.0
        %740 = vmatprep.subr.mxu0 0.0
        %741 = vmatpush1.msra.mxu0 0.0
        %742 = vmatprep.subr.mxu0 0.0
        %743 = vmatpush1.msra.mxu0 0.0
        %744 = vmatprep.subr.mxu0 0.0
        %745 = vmatpush1.msra.mxu0 0.0
        %746 = vmatprep.subr.mxu0 0.0
        %747 = vmatpush1.msra.mxu0 0.0
        %748 = vmatprep.subr.mxu0 0.0
        %749 = vmatpush1.msra.mxu0 0.0
        %750 = vmatprep.subr.mxu0 0.0
        %751 = vmatpush1.msra.mxu0 0.0
        %752 = vmatprep.subr.mxu0 0.0
        %753 = vmatpush1.msra.mxu0 0.0
        %754 = vmatprep.subr.mxu0 0.0
        %755 = vmatpush1.msra.mxu0 0.0
        %756 = vmatprep.subr.mxu0 0.0
        %757 = vmatpush1.msra.mxu0 0.0
        %758 = vmatprep.subr.mxu0 0.0
        %759 = vmatpush1.msra.mxu0 0.0
        %760 = vmatprep.subr.mxu0 0.0
        %761 = vmatpush1.msra.mxu0 0.0
        %762 = vmatprep.subr.mxu0 0.0
        %763 = vmatpush1.msra.mxu0 0.0
        %764 = vmatprep.subr.mxu0 0.0
        %765 = vmatpush1.msra.mxu0 0.0
        %766 = vmatprep.subr.mxu0 0.0
        %767 = vmatpush1.msra.mxu0 0.0
        %768 = vmatprep.subr.mxu0 0.0
        %769 = vmatpush1.msra.mxu0 0.0
        %770 = vmatprep.subr.mxu0 0.0
        %771 = vmatpush1.msra.mxu0 0.0
        %772 = vmatprep.subr.mxu0 0.0
        %773 = vmatpush1.msra.mxu0 0.0
        %774 = vmatprep.subr.mxu0 0.0
        %775 = vmatpush1.msra.mxu0 0.0
        %776 = vmatprep.mubr.f32.mxu0 0.0
        %777 = vmatmul.mubr.f32.gmra.mrb[0].mxu0 %v707
        %v778 = vpop.f32.mrb[0].mxu0
        %v779 = vadd.f32 %v703, %v778
        %v780 = vpop.f32.mrb[0].mxu0
        %781 = vmatprep.mubr.f32.mxu0 0.0
        %782 = vmatmul.mubr.f32.gmra.mrb[0].mxu0 %v710
        %v783 = vpop.f32.mrb[0].mxu0
        %v784 = vadd.f32 %v703, %v783
        %v785 = vpop.f32.mrb[0].mxu0
        %786 = vdwg.mxu0
        %v787 = vadd.f32 %v779, %v376
        %v788 = vadd.f32 %v784, %v377
        %v789 = vsel %vm380, %v787, 0.0
        %790 = vadd.xlane.f32.xlu0 %v789
        %v791 = vpop.xlane.xlu0 %790
        %v792 = vsel %vm380, %v788, 0.0
        %793 = vadd.xlane.f32.xlu0 %v792
        %v794 = vpop.xlane.xlu0 %793
        %v795 = vrcp.pop 32.0
        %v796 = vmul.f32 %v791, %v795
        %v797 = vmul.f32 %v794, %v795
        %v798 = vsub.f32 %v787, %v796
        %v799 = vsub.f32 %v788, %v797
        %v800 = vmul.f32 %v798, %v798
        %v801 = vmul.f32 %v799, %v799
        %v802 = vsel %vm380, %v800, 0.0
        %803 = vadd.xlane.f32.xlu0 %v802
        %v804 = vpop.xlane.xlu0 %803
        %v805 = vsel %vm380, %v801, 0.0
        %806 = vadd.xlane.f32.xlu0 %v805
        %v807 = vpop.xlane.xlu0 %806
        %v808 = vmul.f32 %v804, %v795
        %v809 = vmul.f32 %v807, %v795
        %v810 = vadd.f32 %v808, 1e-05
        %v811 = vadd.f32 %v809, 1e-05
        %v812 = vrsqrt.pop %v810
        %v813 = vrsqrt.pop %v811
        %v814 = vmul.f32 %v798, %v812
        %v815 = vmul.f32 %v799, %v813
        %v816 = vld [vmem:[#allocation12] sm:$0x1]
        %v818 = vlaneseq
        %v819 = vshrl.u32 %v818, 7
        %v820 = vsub.s32 0, %v819
        %v821 = vrot.slane %v816, %v820
        %v823 = vmul.f32 %v814, %v821
        %v824 = vmul.f32 %v815, %v821
        %v825 = vld [vmem:[#allocation14] sm:$0x1]
        %v827 = vlaneseq
        %v828 = vshrl.u32 %v827, 7
        %v829 = vsub.s32 0, %v828
        %v830 = vrot.slane %v825, %v829
        %v832 = vadd.f32 %v823, %v830
        %v833 = vadd.f32 %v824, %v830
        %834 = vst.msk [vmem:[%s375] sm:$0xff] %vm380, %v832
        %835 = vst.msk [vmem:[%s375 + $0x8] sm:$0xff] %vm380, %v833
        %s836 = sand.u32 %s187, 1
        %s837 = scalar_lea.sflag [#allocation5], %s836
        %s838 = sand.u32 %s187, 1
        %s839 = smul.addr %s838, 16
        %s840 = scalar_lea.vmem [#allocation15], %s839
        // Predicated region
        $region77: #{positionwise_ffn.1} parent=47 // pred_check
          %p841 = pneg %p197
        $region78: #{positionwise_ffn.1} parent=47 // pred_check_branch
          %843 = sbr.rel (%p841) target = $region80
        $region79: #{positionwise_ffn.1} parent=47 // pred_region
          %s845 = ssub.s32 256, 256
          %846 = vsyncadd %s837, %s845
          %s847 = smul.addr %s27, 2
          %s848 = smul.addr %s847, 128
          %s849 = scalar_lea.hbm %s7, %s848
          %s850 = sshll.u32 %s840, 4
          %s851 = int_to_ptr.vmem [resolvable:$true] %s850
          %856 = dma.vmem_to_hbm [thread:$0]  %s851, 256, %s849, %s837, 128, 128, 8
        $region80: #{positionwise_ffn.1} parent=47 // pred_fallthru
          _
      $region48: #{positionwise_ffn.1} parent=5 // pred_fallthru
        _
      %p857 = scmp.le.s32.totalorder 2, %s22
      // Predicated region
      $region81: #{positionwise_ffn.1} parent=5 // pred_check
        %p858 = pneg %p857
      $region82: #{positionwise_ffn.1} parent=5 // pred_check_branch
        %860 = sbr.rel (%p858) target = $region84
      $region83: #{positionwise_ffn.1} parent=5 // pred_region
        %s861 = ssub.s32 %s22, 2
        // Predicated region
        $region85: #{positionwise_ffn.1} parent=83 // pred_check
          %p862 = pneg %p203
        $region86: #{positionwise_ffn.1} parent=83 // pred_check_branch
          %864 = sbr.rel (%p862) target = $region88
        $region87: #{positionwise_ffn.1} parent=83 // pred_region
          %s865 = sand.u32 %s188, 1
          %s866 = scalar_lea.sflag [#allocation5], %s865
          %s867 = sand.u32 %s188, 1
          %s868 = smul.addr %s867, 16
          %s869 = scalar_lea.vmem [#allocation15], %s868
          %870 = dma.done %s866, 256
        $region88: #{positionwise_ffn.1} parent=83 // pred_fallthru
          _
      $region84: #{positionwise_ffn.1} parent=5 // pred_fallthru
        _
    $region6: #{positionwise_ffn.1} parent=1 // loop_footer
      %s26 = sadd.s32 1, %s22
    $region7: #{positionwise_ffn.1} parent=1 // loop_footer_branch
      %21 = sbr.rel target = $region3
    $region8: #{positionwise_ffn.1} parent=1 // loop_exit
      _
    %871 = vsyncpa [#allocation4], 1
    %s872 = scalar_lea.sflag [#allocation4], 1
    %873 = vsyncpa %s872, 1
    %874 = vsyncpa [#allocation7], 1
    %875 = vsyncpa [#allocation10], 1
    %876 = vsyncpa [#allocation13], 1
    %877 = vsyncpa [#allocation5], 1
    %s878 = scalar_lea.sflag [#allocation5], 1
    %879 = vsyncpa %s878, 1

</llo_original>
